<compile_context>
chip_gen: v5e
topology: v5e:2x2
jax: 0.10.0
libtpu: 0.0.40
codegen_flags: <defaults>
</compile_context>

<pallas_src>
import jax
import jax.numpy as jnp
from jax.experimental import pallas as pl
from jax.experimental.pallas import tpu as pltpu

EPS = 1e-3                               # matches nn.BatchNorm2d(n, eps=0.001)
_VMEM_LIMIT_BYTES = 48 * 1024 * 1024     # explicit scoped-VMEM limit (v7x phys = 64 MiB)
_BLOCK_BUDGET_BYTES = 4 * 1024 * 1024    # per x block; pass-2 worst case ~ 4x this
_FUSED_MAX_BYTES = 8 * 1024 * 1024       # raw x bytes for the single-kernel fast path
_MAX_UNROLL_GROUPS = 32                  # bound on the pure-VALU 128-lane unroll


# --------------------------------------------------------------------------- #
# Fused small-tensor kernel: whole x resident in VMEM (1 read + 1 write).
# --------------------------------------------------------------------------- #
def _fused_kernel(params_ref, x_ref, o_ref):
    # params_ref: (3, C, 1) f32 = [w0 (broadcast), w1*gamma, w1*beta].
    # x_ref / o_ref: (N, C, HW), the full tensor.
    x = x_ref[...].astype(jnp.float32)                       # (N, C, HW)
    m = x.shape[0] * x.shape[2]                               # static Python int
    s = jnp.sum(jnp.sum(x, axis=0), axis=-1, keepdims=True)          # (C, 1)
    q = jnp.sum(jnp.sum(x * x, axis=0), axis=-1, keepdims=True)      # (C, 1)
    mean = s * (1.0 / m)
    var = jnp.maximum(q * (1.0 / m) - mean * mean, 0.0)       # guard cancellation
    inv_std = jax.lax.rsqrt(var + EPS)
    w0 = params_ref[0]                                        # (C, 1)
    g1 = params_ref[1]                                        # w1 * gamma
    b1 = params_ref[2]                                        # w1 * beta
    scale = w0 + g1 * inv_std                                 # (C, 1)
    shift = b1 - g1 * (mean * inv_std)                        # (C, 1)
    o_ref[...] = (x * scale[None] + shift[None]).astype(o_ref.dtype)


# --------------------------------------------------------------------------- #
# Pass 1: per-(N, C) partial sum / sum-of-squares, lane-dense accumulation.
# --------------------------------------------------------------------------- #
def _make_stats_kernel(hw, t, c):
    n_groups = t // 128
    lane_exact = (t % 128) == 0
    needs_mask = (hw % t) != 0
    unrolled = lane_exact and 1 <= n_groups <= _MAX_UNROLL_GROUPS

    def kernel(x_ref, sum_ref, sumsq_ref, sacc, qacc):
        # x_ref: (1, C, T) block.  sum_ref/sumsq_ref: (1, C, 1) per-N outputs
        # (VMEM-resident across the HW axis).  sacc/qacc: (C, 128) f32 scratch.
        j = pl.program_id(1)

        @pl.when(j == 0)
        def _():
            sacc[...] = jnp.zeros_like(sacc)
            qacc[...] = jnp.zeros_like(qacc)

        x = x_ref[0].astype(jnp.float32)                      # (C, T)
        if needs_mask:
            # Trailing partial tile: zero out-of-range lanes before summing.
            col = jax.lax.broadcasted_iota(jnp.int32, (c, t), 1)
            x = jnp.where(col < (hw - j * t), x, 0.0)

        if unrolled:
            # Pure-VALU accumulation, 128 lanes at a time (co-issues with DMA).
            for g in range(n_groups):
                xg = x[:, g * 128:(g + 1) * 128]
                sacc[...] += xg
                qacc[...] += xg * xg
        else:
            # Many lane groups (small C) or non-128 tile: per-step lane reduce.
            sacc[:, 0:1] += jnp.sum(x, axis=-1, keepdims=True)
            qacc[:, 0:1] += jnp.sum(x * x, axis=-1, keepdims=True)

        @pl.when(j == pl.num_programs(1) - 1)
        def _():
            sum_ref[0] = jnp.sum(sacc[...], axis=-1, keepdims=True)
            sumsq_ref[0] = jnp.sum(qacc[...], axis=-1, keepdims=True)

    return kernel


# --------------------------------------------------------------------------- #
# Pass 2: streaming per-channel affine apply.
# --------------------------------------------------------------------------- #
def _apply_kernel(ss_ref, x_ref, o_ref):
    # ss_ref: (2, C, 1) f32 [scale, shift]; constant block index -> VMEM-resident.
    # x_ref / o_ref: (1, C, T) blocks.  out = scale * x + shift.
    scale = ss_ref[0]                                         # (C, 1)
    shift = ss_ref[1]                                         # (C, 1)
    x = x_ref[0].astype(jnp.float32)                          # (C, T)
    o_ref[0] = (x * scale + shift).astype(o_ref.dtype)


def _pick_hw_tile(hw, c, itemsize):
    """Lane-dense (multiple-of-128) HW tile sized to the VMEM block budget,
    never exceeding the array's HW extent (so trailing tiles stay standard)."""
    if hw < 128:
        return hw                                  # full-dim lane block (tiny)
    budget = max(_BLOCK_BUDGET_BYTES // (c * itemsize), 128)
    t = max(128, (budget // 128) * 128)            # multiple of 128, <= budget
    t = min(t, (hw // 128) * 128)                  # never exceed the array dim
    return int(t)


def adaptive_norm(x_nchw, w0, w1, gamma, beta, *, force_two_pass=False,
                  hw_tile=None):
    """AdaptiveNorm forward.  x_nchw: (N, C, H, W) -> (N, C, H, W), same dtype."""
    n, c, h, w = x_nchw.shape
    hw = h * w
    m = n * hw
    x3d = x_nchw.reshape(n, c, hw)                 # free reshape (same memory order)

    w0f = jnp.asarray(w0, jnp.float32).reshape(())
    w1f = jnp.asarray(w1, jnp.float32).reshape(())
    g32 = gamma.astype(jnp.float32).reshape(c, 1)
    b32 = beta.astype(jnp.float32).reshape(c, 1)

    # ------------------- small-tensor fused fast path -----------------------
    if (not force_two_pass
            and x_nchw.size * x_nchw.dtype.itemsize <= _FUSED_MAX_BYTES):
        params = jnp.stack(
            [jnp.broadcast_to(w0f, (c, 1)), w1f * g32, w1f * b32], axis=0)
        out3d = pl.pallas_call(
            _fused_kernel,
            out_shape=jax.ShapeDtypeStruct((n, c, hw), x_nchw.dtype),
            in_specs=[pl.BlockSpec(memory_space=pltpu.MemorySpace.VMEM),
                      pl.BlockSpec(memory_space=pltpu.MemorySpace.VMEM)],
            out_specs=pl.BlockSpec(memory_space=pltpu.MemorySpace.VMEM),
            compiler_params=pltpu.CompilerParams(
                vmem_limit_bytes=_VMEM_LIMIT_BYTES),
        )(params, x3d)
        return out3d.reshape(n, c, h, w)

    # ----------------------------- two-pass path ----------------------------
    t = hw_tile if hw_tile is not None else _pick_hw_tile(hw, c,
                                                          x3d.dtype.itemsize)
    if hw_tile is not None:
        assert t % 128 == 0 and t <= max(hw, 128), "bad hw_tile override"
    grid = (n, pl.cdiv(hw, t))

    # pass 1: per-(N, C) partial sum / sum(x^2); N axis megacore-parallel.
    sum_nc, sumsq_nc = pl.pallas_call(
        _make_stats_kernel(hw, t, c),
        out_shape=(jax.ShapeDtypeStruct((n, c, 1), jnp.float32),
                   jax.ShapeDtypeStruct((n, c, 1), jnp.float32)),
        grid_spec=pltpu.PrefetchScalarGridSpec(
            num_scalar_prefetch=0,
            grid=grid,
            in_specs=[pl.BlockSpec((1, c, t), lambda i, j: (i, 0, j))],
            out_specs=[pl.BlockSpec((1, c, 1), lambda i, j: (i, 0, 0)),
                       pl.BlockSpec((1, c, 1), lambda i, j: (i, 0, 0))],
            scratch_shapes=[pltpu.VMEM((c, 128), jnp.float32),
                            pltpu.VMEM((c, 128), jnp.float32)]),
        compiler_params=pltpu.CompilerParams(
            dimension_semantics=("parallel", "arbitrary"),
            vmem_limit_bytes=_VMEM_LIMIT_BYTES),
    )(x3d)

    # tiny (C,)-sized glue: combine N partials, fold BN + w0/w1 into one affine.
    # (kept outside the kernel so pass 1 can stay megacore-parallel over N)
    sum_c = jnp.sum(sum_nc, axis=0)                           # (C, 1)
    sumsq_c = jnp.sum(sumsq_nc, axis=0)                       # (C, 1)
    mean = sum_c / m
    var = jnp.maximum(sumsq_c / m - mean * mean, 0.0)         # biased variance
    inv_std = jax.lax.rsqrt(var + EPS)
    scale = w0f + w1f * g32 * inv_std                         # (C, 1)
    shift = w1f * (b32 - g32 * mean * inv_std)                # (C, 1)
    ss = jnp.stack([scale, shift], axis=0)                    # (2, C, 1)

    # pass 2: streaming affine apply, both grid axes parallel.
    out3d = pl.pallas_call(
        _apply_kernel,
        out_shape=jax.ShapeDtypeStruct((n, c, hw), x_nchw.dtype),
        grid_spec=pltpu.PrefetchScalarGridSpec(
            num_scalar_prefetch=0,
            grid=grid,
            in_specs=[pl.BlockSpec((2, c, 1), lambda i, j: (0, 0, 0)),
                      pl.BlockSpec((1, c, t), lambda i, j: (i, 0, j))],
            out_specs=pl.BlockSpec((1, c, t), lambda i, j: (i, 0, j))),
        compiler_params=pltpu.CompilerParams(
            dimension_semantics=("parallel", "parallel"),
            vmem_limit_bytes=_VMEM_LIMIT_BYTES),
    )(ss, x3d)

    return out3d.reshape(n, c, h, w)


if __name__ == "__main__":
    key = jax.random.PRNGKey(0)

    def ref_fn(x, w0, w1, gamma, beta):
        c = x.shape[1]
        mean = jnp.mean(x, axis=(0, 2, 3), keepdims=True)
        var = jnp.mean((x - mean) ** 2, axis=(0, 2, 3), keepdims=True)
        bn = (x - mean) / jnp.sqrt(var + EPS) * gamma.reshape(1, c, 1, 1) \
            + beta.reshape(1, c, 1, 1)
        return w0 * x + w1 * bn

    def check(x, w0, w1, gamma, beta, name, **kw):
        out = adaptive_norm(x, w0, w1, gamma, beta, **kw)
        jax.block_until_ready(out)
        ref = ref_fn(x, w0, w1, gamma, beta)
        assert out.shape == x.shape and out.dtype == x.dtype, f"shape/dtype: {name}"
        assert jnp.allclose(out, ref, atol=1e-4, rtol=1e-4), f"mismatch: {name}"

    N, C, H, W = 2, 4, 16, 16
    k1, k2, k3, k4 = jax.random.split(key, 4)
    x_small = jax.random.normal(k1, (N, C, H, W), dtype=jnp.float32)

    gamma0 = jnp.ones((C,), jnp.float32)
    beta0 = jnp.zeros((C,), jnp.float32)
    gamma1 = jnp.linspace(0.5, 1.5, C).astype(jnp.float32)
    beta1 = jnp.linspace(-0.2, 0.3, C).astype(jnp.float32)

    # (a) default AdaptiveNorm init (w_0 = 1, w_1 = 0): fused fast path.
    check(x_small, 1.0, 0.0, gamma0, beta0, "fused, default init")

    # (b) BatchNorm path actually exercised: fused fast path.
    check(x_small, 0.75, 1.25, gamma1, beta1, "fused, w1 != 0")

    # (c) two-pass path: multi-step HW grid + masked trailing tile (hw = 2304).
    x_mid = jax.random.normal(k2, (2, 4, 48, 48), dtype=jnp.float32)
    check(x_mid, 0.75, 1.25, gamma1, beta1, "two-pass, masked trailing tile",
          force_two_pass=True, hw_tile=512)

    # (d) two-pass path: hw < 128 and not a multiple of 128 (full-dim block).
    x_odd = jax.random.normal(k3, (2, 4, 10, 10), dtype=jnp.float32)
    check(x_odd, 0.75, 1.25, gamma1, beta1, "two-pass, small odd hw",
          force_two_pass=True)

    # (e) two-pass path: large tile -> non-unrolled (per-step reduce) branch.
    x_big = jax.random.normal(k4, (1, 4, 68, 68), dtype=jnp.float32)  # hw = 4624
    check(x_big, 0.75, 1.25, gamma1, beta1, "two-pass, fallback reduce",
          force_two_pass=True, hw_tile=4352)

    print("KERNEL_OK")
</pallas_src>

<mosaic_0001>
module attributes {stable_mosaic.version = 11 : i64} {
  func.func @_fused_kernel(%arg0: memref<3x4x1xf32, #tpu.memory_space<vmem>>, %arg1: memref<2x4x256xf32, #tpu.memory_space<vmem>>, %arg2: memref<2x4x256xf32, #tpu.memory_space<vmem>>) attributes {dimension_semantics = [], scalar_prefetch = 0 : i64, scratch_operands = 0 : i64, tpu.core_type = #tpu.core_type<tc>} {
    %c0 = arith.constant 0 : index
    %c0_0 = arith.constant 0 : index
    %c0_1 = arith.constant 0 : index
    %0 = vector.load %arg1[%c0, %c0_0, %c0_1] : memref<2x4x256xf32, #tpu.memory_space<vmem>>, vector<2x4x256xf32>
    %cst = arith.constant dense<0.000000e+00> : vector<4x256xf32>
    %1 = vector.multi_reduction <add>, %0, %cst [0] : vector<2x4x256xf32> to vector<4x256xf32>
    %cst_2 = arith.constant dense<0.000000e+00> : vector<4xf32>
    %2 = vector.multi_reduction <add>, %1, %cst_2 [1] : vector<4x256xf32> to vector<4xf32>
    %3 = vector.shape_cast %2 : vector<4xf32> to vector<4x1xf32>
    %4 = arith.mulf %0, %0 : vector<2x4x256xf32>
    %cst_3 = arith.constant dense<0.000000e+00> : vector<4x256xf32>
    %5 = vector.multi_reduction <add>, %4, %cst_3 [0] : vector<2x4x256xf32> to vector<4x256xf32>
    %cst_4 = arith.constant dense<0.000000e+00> : vector<4xf32>
    %6 = vector.multi_reduction <add>, %5, %cst_4 [1] : vector<4x256xf32> to vector<4xf32>
    %7 = vector.shape_cast %6 : vector<4xf32> to vector<4x1xf32>
    %cst_5 = arith.constant 0.001953125 : f32
    %8 = vector.broadcast %cst_5 : f32 to vector<4x1xf32>
    %9 = arith.mulf %3, %8 : vector<4x1xf32>
    %cst_6 = arith.constant 0.001953125 : f32
    %10 = vector.broadcast %cst_6 : f32 to vector<4x1xf32>
    %11 = arith.mulf %7, %10 : vector<4x1xf32>
    %12 = arith.mulf %9, %9 : vector<4x1xf32>
    %13 = arith.subf %11, %12 : vector<4x1xf32>
    %cst_7 = arith.constant 0.000000e+00 : f32
    %14 = vector.broadcast %cst_7 : f32 to vector<4x1xf32>
    %15 = arith.maximumf %13, %14 : vector<4x1xf32>
    %cst_8 = arith.constant 1.000000e-03 : f32
    %16 = vector.broadcast %cst_8 : f32 to vector<4x1xf32>
    %17 = arith.addf %15, %16 : vector<4x1xf32>
    %18 = math.rsqrt %17 : vector<4x1xf32>
    %c0_9 = arith.constant 0 : index
    %c0_10 = arith.constant 0 : index
    %c0_11 = arith.constant 0 : index
    %19 = vector.load %arg0[%c0_9, %c0_10, %c0_11] : memref<3x4x1xf32, #tpu.memory_space<vmem>>, vector<1x4x1xf32>
    %20 = vector.shape_cast %19 : vector<1x4x1xf32> to vector<4x1xf32>
    %c1 = arith.constant 1 : index
    %c0_12 = arith.constant 0 : index
    %c0_13 = arith.constant 0 : index
    %21 = vector.load %arg0[%c1, %c0_12, %c0_13] : memref<3x4x1xf32, #tpu.memory_space<vmem>>, vector<1x4x1xf32>
    %22 = vector.shape_cast %21 : vector<1x4x1xf32> to vector<4x1xf32>
    %c2 = arith.constant 2 : index
    %c0_14 = arith.constant 0 : index
    %c0_15 = arith.constant 0 : index
    %23 = vector.load %arg0[%c2, %c0_14, %c0_15] : memref<3x4x1xf32, #tpu.memory_space<vmem>>, vector<1x4x1xf32>
    %24 = vector.shape_cast %23 : vector<1x4x1xf32> to vector<4x1xf32>
    %25 = arith.mulf %22, %18 : vector<4x1xf32>
    %26 = arith.addf %20, %25 : vector<4x1xf32>
    %27 = arith.mulf %9, %18 : vector<4x1xf32>
    %28 = arith.mulf %22, %27 : vector<4x1xf32>
    %29 = arith.subf %24, %28 : vector<4x1xf32>
    %30 = vector.shape_cast %26 : vector<4x1xf32> to vector<1x4x1xf32>
    %31 = vector.broadcast %30 : vector<1x4x1xf32> to vector<2x4x256xf32>
    %32 = arith.mulf %0, %31 : vector<2x4x256xf32>
    %33 = vector.shape_cast %29 : vector<4x1xf32> to vector<1x4x1xf32>
    %34 = vector.broadcast %33 : vector<1x4x1xf32> to vector<2x4x256xf32>
    %35 = arith.addf %32, %34 : vector<2x4x256xf32>
    %c0_16 = arith.constant 0 : index
    %c0_17 = arith.constant 0 : index
    %c0_18 = arith.constant 0 : index
    %36 = vector.load %arg2[%c0_16, %c0_17, %c0_18] : memref<2x4x256xf32, #tpu.memory_space<vmem>>, vector<2x4x256xf32>
    tpu.vector_store %arg2[%c0_16, %c0_17, %c0_18], %35 {strides = array<i32>} : memref<2x4x256xf32, #tpu.memory_space<vmem>>, vector<2x4x256xf32>,
    return
  }
}

</mosaic_0001>

<llo_original>
// kernel: tpu_custom_call.1
$region0: #{tpu_custom_call.1}
  #allocation0 [shape = 'u32[]', space=smem, size = 0x4, offset = 0x4, fixed_abs, tag = 'smem constant byte address 0x4 - core index']
  #allocation1 [shape = 'u32[72,128]{1,0:T(1,128)}', space=vmem, size = 0x9000, scoped, tag = 'internal scratch']
  %s0 = inlined_call_operand.vmem [shape: f32[3,4,1], index: 0, kind: input, shape index: {}]
  %s1 = inlined_call_operand.hbm [shape: f32[2,4,256], index: 1, kind: input, shape index: {}]
  %s2 = inlined_call_operand.hbm [shape: f32[2,4,256], index: 2, kind: output, shape index: {}]
  %s3 = sld [smem:[#allocation0]]
  $region22: #{tpu_custom_call.1} parent=0
    _
  %s5 = ssub.s32 1, %s3
  %s6 = scalar_select 0, %s5, %s3
  $region1: #{tpu_custom_call.1} parent=0
    #allocation2 [shape = 'u8[8192]{0}', space=vmem, size = 0x2000, scoped, tag = 'input window, operand 1, single buffered']
    #allocation3 [shape = 's32[1]{0}', space=sflag, size = 0x4, scoped, tag = 'scoped memory for tpu_custom_call.1']
    #allocation4 [shape = 's32[1]{0}', space=sflag, size = 0x4, scoped, tag = 'scoped memory for tpu_custom_call.1']
    #allocation5 [shape = 'u8[8192]{0}', space=vmem, size = 0x2000, scoped, tag = 'output window, operand 0, single buffered']
    %7 = vsyncpa [#allocation3], 0
    %8 = vsyncpa [#allocation4], 0
    // Predicated region
    $region2: #{tpu_custom_call.1} parent=1 // pred_check
      _
    $region3: #{tpu_custom_call.1} parent=1 // pred_check_branch
      %10 = sbr.rel (0) target = $region5
    $region4: #{tpu_custom_call.1} parent=1 // pred_region
      _
    $region5: #{tpu_custom_call.1} parent=1 // pred_fallthru
      _
    // Predicated region
    $region6: #{tpu_custom_call.1} parent=1 // pred_check
      _
    $region7: #{tpu_custom_call.1} parent=1 // pred_check_branch
      %12 = sbr.rel (0) target = $region9
    $region8: #{tpu_custom_call.1} parent=1 // pred_region
      %14 = vsyncadd [#allocation3], 0
      %s15 = sshll.u32 %s1, 4
      %s16 = int_to_ptr.hbm [resolvable:$true] %s15
      %s17 = sshll.u32 [#allocation2], 4
      %s18 = int_to_ptr.vmem [resolvable:$true] %s17
      %23 = dma.hbm_to_vmem [thread:$0]  %s16, 256, %s18, [#allocation3], 128, 128, 8
    $region9: #{tpu_custom_call.1} parent=1 // pred_fallthru
      _
    // Predicated region
    $region10: #{tpu_custom_call.1} parent=1 // pred_check
      _
    $region11: #{tpu_custom_call.1} parent=1 // pred_check_branch
      %25 = sbr.rel (0) target = $region13
    $region12: #{tpu_custom_call.1} parent=1 // pred_region
      %27 = dma.done [#allocation3], 256
    $region13: #{tpu_custom_call.1} parent=1 // pred_fallthru
      _
    %v28 = vld [vmem:[#allocation2] sm:$0xff]
    %v29 = vld [vmem:[#allocation2 + $0x8] sm:$0xff]
    %32 = vst [vmem:[#allocation1] ss:$2 sm:$0xff] %v28
    %v33 = vld.sshfl [vmem:[#allocation1] sm:$0xff pattern:$0x75316420]
    %v34 = vld.sshfl [vmem:[#allocation1 + $0x8] sm:$0xff pattern:$0x75316420]
    %s35 = scalar_lea.vmem [#allocation1], 16
    %36 = vst [vmem:[%s35] ss:$2 sm:$0xff] %v29
    %v37 = vld.sshfl [vmem:[#allocation1 + $0x10] sm:$0xff pattern:$0x75316420]
    %v38 = vld.sshfl [vmem:[#allocation1 + $0x18] sm:$0xff pattern:$0x75316420]
    %vm43 = vcmask 1043456
    %v44 = vsel %vm43, %v33, 0.0
    %v45 = vsel %vm43, %v37, 0.0
    %v46 = vadd.f32 %v44, %v45
    %v47 = vsel %vm43, %v34, 0.0
    %v48 = vsel %vm43, %v38, 0.0
    %v49 = vadd.f32 %v47, %v48
    %v50 = vsel %vm43, %v46, 0.0
    %v51 = vsel %vm43, %v49, 0.0
    %v52 = vadd.f32 %v50, %v51
    %53 = vadd.xlane.f32.xlu0 %v52
    %v54 = vpop.xlane.xlu0 %53
    %v55 = vmul.f32 %v28, %v28
    %v56 = vmul.f32 %v29, %v29
    %59 = vst [vmem:[#allocation1] ss:$2 sm:$0xff] %v55
    %v60 = vld.sshfl [vmem:[#allocation1] sm:$0xff pattern:$0x75316420]
    %v61 = vld.sshfl [vmem:[#allocation1 + $0x8] sm:$0xff pattern:$0x75316420]
    %s62 = scalar_lea.vmem [#allocation1], 16
    %63 = vst [vmem:[%s62] ss:$2 sm:$0xff] %v56
    %v64 = vld.sshfl [vmem:[#allocation1 + $0x10] sm:$0xff pattern:$0x75316420]
    %v65 = vld.sshfl [vmem:[#allocation1 + $0x18] sm:$0xff pattern:$0x75316420]
    %v70 = vsel %vm43, %v60, 0.0
    %v71 = vsel %vm43, %v64, 0.0
    %v72 = vadd.f32 %v70, %v71
    %v73 = vsel %vm43, %v61, 0.0
    %v74 = vsel %vm43, %v65, 0.0
    %v75 = vadd.f32 %v73, %v74
    %v76 = vsel %vm43, %v72, 0.0
    %v77 = vsel %vm43, %v75, 0.0
    %v78 = vadd.f32 %v76, %v77
    %79 = vadd.xlane.f32.xlu0 %v78
    %v80 = vpop.xlane.xlu0 %79
    %v81 = vmul.f32 %v54, 0.001953125
    %v82 = vmul.f32 %v80, 0.001953125
    %v83 = vmul.f32 %v81, %v81
    %v84 = vsub.f32 %v82, %v83
    %v85 = vmax.f32 %v84, 0.0
    %v86 = vadd.f32 %v85, 0.001
    %v87 = vrsqrt.pop %v86
    %v88 = vmul.f32 %v87, %v86
    %v89 = vmul.f32 %v88, %v87
    %v90 = vmul.f32 0.5, %v89
    %v91 = vsub.f32 1.5, %v90
    %v92 = vmul.f32 %v87, %v91
    %vm93 = vweird.f32 %v86
    %vm94 = vweird.f32 %v87
    %vm95 = vmor %vm93, %vm94
    %v96 = vsel %vm95, %v87, %v92
    %v97 = vld [vmem:[%s0] sm:$0xf]
    %s98 = scalar_lea.vmem %s0, 4
    %v99 = vld [vmem:[%s98] sm:$0xf]
    %s100 = scalar_lea.vmem %s0, 8
    %v101 = vld [vmem:[%s100] sm:$0xf]
    %v102 = vmul.f32 %v99, %v96
    %v103 = vadd.f32 %v97, %v102
    %v104 = vmul.f32 %v81, %v96
    %v105 = vmul.f32 %v99, %v104
    %v106 = vsub.f32 %v101, %v105
    %108 = vset.pattern.permute.xlu0 0
    %109 = vperm.xlu0 %108, %v103
    %v110 = vpop.permute.xlu0 %109
    %v112 = vunpack.c.l.s4 839922192
    %v113 = vunpack.c.0.s8 %v112
    %v114 = vperm.slane %v110, %v113
    %v116 = vmul.f32 %v28, %v114
    %v117 = vmul.f32 %v29, %v114
    %119 = vset.pattern.permute.xlu0 0
    %120 = vperm.xlu0 %119, %v106
    %v121 = vpop.permute.xlu0 %120
    %v123 = vunpack.c.l.s4 839922192
    %v124 = vunpack.c.0.s8 %v123
    %v125 = vperm.slane %v121, %v124
    %v127 = vadd.f32 %v116, %v125
    %v128 = vadd.f32 %v117, %v125
    %129 = vst [vmem:[#allocation5] sm:$0xff] %v127
    %130 = vst [vmem:[#allocation5 + $0x8] sm:$0xff] %v128
    // Predicated region
    $region14: #{tpu_custom_call.1} parent=1 // pred_check
      _
    $region15: #{tpu_custom_call.1} parent=1 // pred_check_branch
      %132 = sbr.rel (0) target = $region17
    $region16: #{tpu_custom_call.1} parent=1 // pred_region
      %134 = vsyncadd [#allocation4], 0
      %s135 = sshll.u32 [#allocation5], 4
      %s136 = int_to_ptr.vmem [resolvable:$true] %s135
      %s137 = sshll.u32 %s2, 4
      %s138 = int_to_ptr.hbm [resolvable:$true] %s137
      %143 = dma.vmem_to_hbm [thread:$0]  %s136, 256, %s138, [#allocation4], 128, 128, 8
    $region17: #{tpu_custom_call.1} parent=1 // pred_fallthru
      _
    // Predicated region
    $region18: #{tpu_custom_call.1} parent=1 // pred_check
      _
    $region19: #{tpu_custom_call.1} parent=1 // pred_check_branch
      %145 = sbr.rel (0) target = $region21
    $region20: #{tpu_custom_call.1} parent=1 // pred_region
      %147 = dma.done [#allocation4], 256
    $region21: #{tpu_custom_call.1} parent=1 // pred_fallthru
      _
    %148 = vsyncpa [#allocation3], 1
    %149 = vsyncpa [#allocation4], 1

</llo_original>
